<compile_context>
chip_gen: v6e
topology: v6e:2x2x1
jax: 0.10.0
libtpu: 0.0.40
codegen_flags: <defaults>
</compile_context>

<pallas_src>
import jax
import jax.numpy as jnp
from jax.experimental import pallas as pl
from jax.experimental.pallas import tpu as pltpu


_VMEM_BUDGET_BYTES = 12 * 1024 * 1024   # conservative block budget (fits v5e default scoped)
_VMEM_LIMIT_BYTES = 32 * 1024 * 1024    # explicit scoped limit, safe on v5e/v6e/v7x


def _round_up(a, b):
    return (a + b - 1) // b * b


def _cdiv(a, b):
    return -(-a // b)


# ----------------------------- kernel -----------------------------
def _make_kernel(*, gamma, ignore_index, n_rows, tile_rows, steps_per_group, has_weight):
    gamma = float(gamma)

    def kernel(*refs):
        if has_weight:
            logits_ref, tgt_ref, w_ref, nll_out, cnt_out, acc_nll, acc_cnt = refs
        else:
            logits_ref, tgt_ref, nll_out, cnt_out, acc_nll, acc_cnt = refs
            w_ref = None

        g = pl.program_id(0)   # row group ("parallel": one per TensorCore on v7x)
        s = pl.program_id(1)   # step within group ("arbitrary": reduction axis)

        @pl.when(s == 0)
        def _init():
            acc_nll[...] = jnp.zeros_like(acc_nll)
            acc_cnt[...] = jnp.zeros_like(acc_cnt)

        # Intended (unclamped) row offset of this tile -> row validity mask.  Tiles whose
        # index was clamped in the index_map (grid overhang) get row_valid == False
        # everywhere and contribute exactly zero.
        tile_start = (g * steps_per_group + s) * tile_rows
        row_id = tile_start + jax.lax.broadcasted_iota(jnp.int32, (tile_rows, 1), 0)
        row_valid = row_id < n_rows                                   # (TR, 1) bool

        x = logits_ref[...].astype(jnp.float32)                       # (TR, C) upcast in-kernel
        x = jnp.where(row_valid, x, 0.0)                              # neutralize OOB/garbage rows
        tgt = tgt_ref[...]                                            # (TR, 1) int32

        # log-softmax stats over the class dim (single max/exp/sum pass)
        m = jnp.max(x, axis=-1, keepdims=True)
        ex = jnp.exp(x - m)
        lse = m + jnp.log(jnp.sum(ex, axis=-1, keepdims=True))

        # pick target column via compare + reduce (no gather)
        col = jax.lax.broadcasted_iota(jnp.int32, x.shape, 1)
        is_t = col == tgt                                             # all-False for ignored rows
        logit_t = jnp.sum(jnp.where(is_t, x, 0.0), axis=-1, keepdims=True)

        active = jnp.logical_and(row_valid, tgt != ignore_index)      # (TR, 1) bool

        logpt = jnp.minimum(logit_t - lse, 0.0)                       # log p_t  (clamped <= 0)
        one_m_pt = 1.0 - jnp.exp(logpt)                               # in [0, 1]
        if gamma.is_integer():
            fm = jax.lax.integer_pow(one_m_pt, int(gamma))            # gamma=2 -> one multiply
        else:
            fm = jnp.power(one_m_pt, jnp.float32(gamma))
        focal_logpt = fm * logpt                                      # <= 0

        # Accumulate per-row into resident (TR,1) accumulators; scalar collapse deferred.
        if has_weight:
            w_t = jnp.sum(jnp.where(is_t, w_ref[...], 0.0), axis=-1, keepdims=True)
            wa = jnp.where(active, w_t, 0.0)
            acc_nll[...] += focal_logpt * wa
            acc_cnt[...] += wa
        else:
            acc_nll[...] += jnp.where(active, focal_logpt, 0.0)
            acc_cnt[...] += active.astype(jnp.float32)

        @pl.when(s == pl.num_programs(1) - 1)
        def _finalize():
            nll_out[...] = jnp.broadcast_to(jnp.sum(acc_nll[...]), nll_out.shape)
            cnt_out[...] = jnp.broadcast_to(jnp.sum(acc_cnt[...]), cnt_out.shape)

    return kernel


# ----------------------------- wrapper -----------------------------
def focal_loss(logits, targets, *, gamma=2, weight=None, ignore_index=-100):
    """logits: [N, C] (f32 or bf16), targets: [N] int class ids. Returns scalar loss."""
    N, C = logits.shape
    targets = jnp.asarray(targets, jnp.int32).reshape(N, 1)

    itemsize = jnp.dtype(logits.dtype).itemsize
    cpl = _round_up(C, 128)        # lane-padded width a VMEM block occupies

    # Adaptive row tile: largest multiple of 16 whose double-buffered blocks + f32
    # intermediates + (TR,1) accumulators fit the conservative budget.
    bytes_per_row = (2 * cpl * itemsize     # double-buffered logits block
                     + 2 * 128 * 4          # double-buffered (TR,1) targets block (lane-padded)
                     + 2 * 128 * 4          # two (TR,1) f32 accumulators
                     + 4 * cpl * 4)         # headroom for in-kernel f32 intermediates
    tr = int(_VMEM_BUDGET_BYTES // bytes_per_row) // 16 * 16
    tr = max(16, min(tr, 2048, _round_up(N, 16)))
    # TODO(synk): for vocab-scale C on v7x a second "arbitrary" C-chunk axis with an
    # online-softmax running max/sum would keep double-buffering alive; not needed for NER.

    nt = _cdiv(N, tr)              # number of row tiles
    groups = 2 if nt >= 2 else 1   # v7x: one group per TensorCore; harmless on v5e/v6e
    steps = _cdiv(nt, groups)      # steps per group

    def row_block(g, s):
        # clamp so grid overhang never produces a fully out-of-bounds block; the kernel
        # masks the duplicated tile via row_id >= N.
        return (jnp.minimum(g * steps + s, nt - 1), 0)

    in_specs = [pl.BlockSpec((tr, C), row_block),
                pl.BlockSpec((tr, 1), row_block)]
    args = [logits, targets]
    has_weight = weight is not None
    if has_weight:
        w = jnp.asarray(weight, jnp.float32).reshape(1, C)
        in_specs.append(pl.BlockSpec((1, C), lambda g, s: (0, 0)))
        args.append(w)

    kernel = _make_kernel(gamma=gamma, ignore_index=ignore_index, n_rows=N,
                          tile_rows=tr, steps_per_group=steps, has_weight=has_weight)

    part_nll, part_cnt = pl.pallas_call(
        kernel,
        out_shape=(jax.ShapeDtypeStruct((groups, 8, 128), jnp.float32),
                   jax.ShapeDtypeStruct((groups, 8, 128), jnp.float32)),
        grid=(groups, steps),
        in_specs=in_specs,
        out_specs=(pl.BlockSpec((1, 8, 128), lambda g, s: (g, 0, 0)),
                   pl.BlockSpec((1, 8, 128), lambda g, s: (g, 0, 0))),
        scratch_shapes=[pltpu.VMEM((tr, 1), jnp.float32),   # running per-row focal*w sums
                        pltpu.VMEM((tr, 1), jnp.float32)],  # running per-row active weights
        compiler_params=pltpu.CompilerParams(
            dimension_semantics=("parallel", "arbitrary"),
            vmem_limit_bytes=_VMEM_LIMIT_BYTES),
    )(*args)

    total = jnp.sum(part_nll[:, 0, 0])   # sum of focal*logpt*w over active rows (<= 0)
    count = jnp.sum(part_cnt[:, 0, 0])   # sum of w[target] over active rows
    # TODO(synk): PyTorch nll_loss returns NaN (0/0) when every target is ignored; we
    # return 0.0 in that degenerate case and divide by the true weight sum otherwise.
    return jnp.where(count > 0, -total / count, jnp.float32(0.0))


# ----------------------------- pure-JAX reference -----------------------------
def focal_loss_ref(logits, targets, *, gamma=2, weight=None, ignore_index=-100):
    logits = logits.astype(jnp.float32)
    logp = jax.nn.log_softmax(logits, axis=-1)
    pt = jnp.exp(logp)
    mod_logp = (1.0 - pt) ** gamma * logp
    active = targets != ignore_index
    safe_t = jnp.where(active, targets, 0)
    picked = jnp.take_along_axis(mod_logp, safe_t[:, None], axis=1)[:, 0]
    if weight is None:
        w_t = jnp.ones_like(picked)
    else:
        w_t = jnp.asarray(weight, jnp.float32)[safe_t]
    num = jnp.sum(jnp.where(active, -picked * w_t, 0.0))
    den = jnp.sum(jnp.where(active, w_t, 0.0))
    return jnp.where(den > 0, num / den, 0.0)


# ----------------------------- main -----------------------------
if __name__ == "__main__":
    key = jax.random.PRNGKey(0)
    k1, k2, k3, k4 = jax.random.split(key, 4)

    # Case 1: small NER-like shape, unweighted, ignore_index rows.
    N, C = 16, 32
    logits = 2.0 * jax.random.normal(k1, (N, C), jnp.float32)
    targets = jax.random.randint(k2, (N,), 0, C, dtype=jnp.int32)
    targets = targets.at[0].set(-100).at[5].set(-100)
    loss = jax.jit(lambda a, b: focal_loss(a, b, gamma=2))(logits, targets)
    jax.block_until_ready(loss)
    ref = focal_loss_ref(logits, targets, gamma=2)
    assert jnp.isfinite(loss)
    assert jnp.allclose(loss, ref, rtol=1e-4, atol=1e-5), (float(loss), float(ref))

    # Case 2: ragged N (not a multiple of 8 / TR), odd C, per-class weights.
    N2, C2 = 50, 7
    logits2 = jax.random.normal(k3, (N2, C2), jnp.float32)
    targets2 = jax.random.randint(k4, (N2,), 0, C2, dtype=jnp.int32)
    targets2 = targets2.at[3].set(-100)
    w2 = jnp.linspace(0.1, 1.0, C2).astype(jnp.float32)
    loss2 = jax.jit(lambda a, b, w: focal_loss(a, b, gamma=2, weight=w))(logits2, targets2, w2)
    jax.block_until_ready(loss2)
    ref2 = focal_loss_ref(logits2, targets2, gamma=2, weight=w2)
    assert jnp.isfinite(loss2)
    assert jnp.allclose(loss2, ref2, rtol=1e-4, atol=1e-5), (float(loss2), float(ref2))

    # Case 3: multi-tile bf16 logits (exercises 2-group grid, clamped overhang tile,
    # partial last tile, native-dtype streaming with in-kernel upcast).
    N3, C3 = 5000, 32
    logits3 = (2.0 * jax.random.normal(k1, (N3, C3), jnp.float32)).astype(jnp.bfloat16)
    targets3 = jax.random.randint(k2, (N3,), 0, C3, dtype=jnp.int32)
    targets3 = targets3.at[::7].set(-100)
    loss3 = jax.jit(lambda a, b: focal_loss(a, b, gamma=2))(logits3, targets3)
    jax.block_until_ready(loss3)
    ref3 = focal_loss_ref(logits3, targets3, gamma=2)
    assert jnp.isfinite(loss3)
    assert jnp.allclose(loss3, ref3, rtol=1e-4, atol=1e-4), (float(loss3), float(ref3))

    print("KERNEL_OK")
</pallas_src>

<mosaic_0001>
module attributes {stable_mosaic.version = 11 : i64} {
  func.func @kernel(%arg0: i32, %arg1: i32, %arg2: memref<16x32xf32, #tpu.memory_space<vmem>>, %arg3: memref<16x1xi32, #tpu.memory_space<vmem>>, %arg4: memref<1x8x128xf32, #tpu.memory_space<vmem>>, %arg5: memref<1x8x128xf32, #tpu.memory_space<vmem>>, %arg6: memref<16x1xf32, #tpu.memory_space<vmem>>, %arg7: memref<16x1xf32, #tpu.memory_space<vmem>>) attributes {dimension_semantics = [#tpu.dimension_semantics<parallel>, #tpu.dimension_semantics<arbitrary>], iteration_bounds = array<i64: 1, 1>, scalar_prefetch = 0 : i64, scratch_operands = 2 : i64, tpu.core_type = #tpu.core_type<tc>, window_params = [{transform_indices = @transform_0, window_bounds = array<i64: 16, 32>}, {transform_indices = @transform_1, window_bounds = array<i64: 16, 1>}, {transform_indices = @transform_2, window_bounds = array<i64: 1, 8, 128>}, {transform_indices = @transform_3, window_bounds = array<i64: 1, 8, 128>}]} {
    %c0_i32 = arith.constant 0 : i32
    %0 = arith.cmpi eq, %arg1, %c0_i32 : i32
    %1 = arith.extui %0 : i1 to i32
    %c0_i32_0 = arith.constant 0 : i32
    %2 = arith.cmpi ne, %1, %c0_i32_0 : i32
    scf.if %2 {
      %cst_22 = arith.constant 0.000000e+00 : f32
      %57 = vector.broadcast %cst_22 : f32 to vector<16x1xf32>
      %c0_23 = arith.constant 0 : index
      %c0_24 = arith.constant 0 : index
      %58 = vector.load %arg6[%c0_23, %c0_24] : memref<16x1xf32, #tpu.memory_space<vmem>>, vector<16x1xf32>
      tpu.vector_store %arg6[%c0_23, %c0_24], %57 {strides = array<i32>} : memref<16x1xf32, #tpu.memory_space<vmem>>, vector<16x1xf32>,
      %cst_25 = arith.constant 0.000000e+00 : f32
      %59 = vector.broadcast %cst_25 : f32 to vector<16x1xf32>
      %c0_26 = arith.constant 0 : index
      %c0_27 = arith.constant 0 : index
      %60 = vector.load %arg7[%c0_26, %c0_27] : memref<16x1xf32, #tpu.memory_space<vmem>>, vector<16x1xf32>
      tpu.vector_store %arg7[%c0_26, %c0_27], %59 {strides = array<i32>} : memref<16x1xf32, #tpu.memory_space<vmem>>, vector<16x1xf32>,
    } else {
    }
    %c1_i32 = arith.constant 1 : i32
    %3 = arith.muli %arg0, %c1_i32 : i32
    %4 = arith.addi %3, %arg1 : i32
    %c16_i32 = arith.constant 16 : i32
    %5 = arith.muli %4, %c16_i32 : i32
    %6 = tpu.iota {dimensions = array<i32: 0>} : vector<16x1xi32>
    %7 = vector.broadcast %5 : i32 to vector<16x1xi32>
    %8 = arith.addi %7, %6 : vector<16x1xi32>
    %c16_i32_1 = arith.constant 16 : i32
    %9 = vector.broadcast %c16_i32_1 : i32 to vector<16x1xi32>
    %10 = arith.cmpi slt, %8, %9 : vector<16x1xi32>
    %c0 = arith.constant 0 : index
    %c0_2 = arith.constant 0 : index
    %11 = vector.load %arg2[%c0, %c0_2] : memref<16x32xf32, #tpu.memory_space<vmem>>, vector<16x32xf32>
    %cst = arith.constant 0.000000e+00 : f32
    %12 = vector.shape_cast %10 : vector<16x1xi1> to vector<16x1xi1>
    %13 = vector.broadcast %12 : vector<16x1xi1> to vector<16x32xi1>
    %14 = vector.broadcast %cst : f32 to vector<16x32xf32>
    %15 = arith.select %13, %11, %14 : vector<16x32xi1>, vector<16x32xf32>
    %c0_3 = arith.constant 0 : index
    %c0_4 = arith.constant 0 : index
    %16 = vector.load %arg3[%c0_3, %c0_4] : memref<16x1xi32, #tpu.memory_space<vmem>>, vector<16x1xi32>
    %cst_5 = arith.constant dense<0xFF800000> : vector<16xf32>
    %17 = vector.multi_reduction <maximumf>, %15, %cst_5 [1] : vector<16x32xf32> to vector<16xf32>
    %18 = vector.shape_cast %17 : vector<16xf32> to vector<16x1xf32>
    %19 = vector.broadcast %18 : vector<16x1xf32> to vector<16x32xf32>
    %20 = arith.subf %15, %19 : vector<16x32xf32>
    %21 = math.exp %20 : vector<16x32xf32>
    %cst_6 = arith.constant dense<0.000000e+00> : vector<16xf32>
    %22 = vector.multi_reduction <add>, %21, %cst_6 [1] : vector<16x32xf32> to vector<16xf32>
    %23 = vector.shape_cast %22 : vector<16xf32> to vector<16x1xf32>
    %24 = math.log %23 : vector<16x1xf32>
    %25 = arith.addf %18, %24 : vector<16x1xf32>
    %26 = tpu.iota {dimensions = array<i32: 1>} : vector<16x32xi32>
    %27 = vector.broadcast %16 : vector<16x1xi32> to vector<16x32xi32>
    %28 = arith.cmpi eq, %26, %27 : vector<16x32xi32>
    %cst_7 = arith.constant 0.000000e+00 : f32
    %29 = vector.broadcast %cst_7 : f32 to vector<16x32xf32>
    %30 = arith.select %28, %15, %29 : vector<16x32xi1>, vector<16x32xf32>
    %cst_8 = arith.constant dense<0.000000e+00> : vector<16xf32>
    %31 = vector.multi_reduction <add>, %30, %cst_8 [1] : vector<16x32xf32> to vector<16xf32>
    %32 = vector.shape_cast %31 : vector<16xf32> to vector<16x1xf32>
    %c-100_i32 = arith.constant -100 : i32
    %33 = vector.broadcast %c-100_i32 : i32 to vector<16x1xi32>
    %34 = arith.cmpi ne, %16, %33 : vector<16x1xi32>
    %35 = arith.andi %10, %34 : vector<16x1xi1>
    %36 = arith.subf %32, %25 : vector<16x1xf32>
    %cst_9 = arith.constant 0.000000e+00 : f32
    %37 = vector.broadcast %cst_9 : f32 to vector<16x1xf32>
    %38 = arith.minimumf %36, %37 : vector<16x1xf32>
    %39 = math.exp %38 : vector<16x1xf32>
    %cst_10 = arith.constant 1.000000e+00 : f32
    %40 = vector.broadcast %cst_10 : f32 to vector<16x1xf32>
    %41 = arith.subf %40, %39 : vector<16x1xf32>
    %42 = arith.mulf %41, %41 : vector<16x1xf32>
    %43 = arith.mulf %42, %38 : vector<16x1xf32>
    %c0_11 = arith.constant 0 : index
    %c0_12 = arith.constant 0 : index
    %44 = vector.load %arg6[%c0_11, %c0_12] : memref<16x1xf32, #tpu.memory_space<vmem>>, vector<16x1xf32>
    %cst_13 = arith.constant 0.000000e+00 : f32
    %45 = vector.broadcast %cst_13 : f32 to vector<16x1xf32>
    %46 = arith.select %35, %43, %45 : vector<16x1xi1>, vector<16x1xf32>
    %47 = arith.addf %44, %46 : vector<16x1xf32>
    %c0_14 = arith.constant 0 : index
    %c0_15 = arith.constant 0 : index
    %48 = vector.load %arg6[%c0_14, %c0_15] : memref<16x1xf32, #tpu.memory_space<vmem>>, vector<16x1xf32>
    tpu.vector_store %arg6[%c0_14, %c0_15], %47 {strides = array<i32>} : memref<16x1xf32, #tpu.memory_space<vmem>>, vector<16x1xf32>,
    %c0_16 = arith.constant 0 : index
    %c0_17 = arith.constant 0 : index
    %49 = vector.load %arg7[%c0_16, %c0_17] : memref<16x1xf32, #tpu.memory_space<vmem>>, vector<16x1xf32>
    %50 = arith.extui %35 : vector<16x1xi1> to vector<16x1xi32>
    %51 = arith.sitofp %50 : vector<16x1xi32> to vector<16x1xf32>
    %52 = arith.addf %49, %51 : vector<16x1xf32>
    %c0_18 = arith.constant 0 : index
    %c0_19 = arith.constant 0 : index
    %53 = vector.load %arg7[%c0_18, %c0_19] : memref<16x1xf32, #tpu.memory_space<vmem>>, vector<16x1xf32>
    tpu.vector_store %arg7[%c0_18, %c0_19], %52 {strides = array<i32>} : memref<16x1xf32, #tpu.memory_space<vmem>>, vector<16x1xf32>,
    %c0_i32_20 = arith.constant 0 : i32
    %54 = arith.cmpi eq, %arg1, %c0_i32_20 : i32
    %55 = arith.extui %54 : i1 to i32
    %c0_i32_21 = arith.constant 0 : i32
    %56 = arith.cmpi ne, %55, %c0_i32_21 : i32
    scf.if %56 {
      %c0_22 = arith.constant 0 : index
      %c0_23 = arith.constant 0 : index
      %57 = vector.load %arg6[%c0_22, %c0_23] : memref<16x1xf32, #tpu.memory_space<vmem>>, vector<16x1xf32>
      %58 = vector.shape_cast %57 : vector<16x1xf32> to vector<1x16x1xf32>
      %cst_24 = arith.constant dense<0.000000e+00> : vector<1xf32>
      %59 = vector.multi_reduction <add>, %58, %cst_24 [1, 2] : vector<1x16x1xf32> to vector<1xf32>
      %60 = vector.shape_cast %59 : vector<1xf32> to vector<1x1x1xf32>
      %61 = vector.extract %60[0, 0, 0] : f32 from vector<1x1x1xf32>
      %62 = vector.broadcast %61 : f32 to vector<1x8x128xf32>
      %c0_25 = arith.constant 0 : index
      %c0_26 = arith.constant 0 : index
      %c0_27 = arith.constant 0 : index
      %63 = vector.load %arg4[%c0_25, %c0_26, %c0_27] : memref<1x8x128xf32, #tpu.memory_space<vmem>>, vector<1x8x128xf32>
      tpu.vector_store %arg4[%c0_25, %c0_26, %c0_27], %62 {strides = array<i32>} : memref<1x8x128xf32, #tpu.memory_space<vmem>>, vector<1x8x128xf32>,
      %c0_28 = arith.constant 0 : index
      %c0_29 = arith.constant 0 : index
      %64 = vector.load %arg7[%c0_28, %c0_29] : memref<16x1xf32, #tpu.memory_space<vmem>>, vector<16x1xf32>
      %65 = vector.shape_cast %64 : vector<16x1xf32> to vector<1x16x1xf32>
      %cst_30 = arith.constant dense<0.000000e+00> : vector<1xf32>
      %66 = vector.multi_reduction <add>, %65, %cst_30 [1, 2] : vector<1x16x1xf32> to vector<1xf32>
      %67 = vector.shape_cast %66 : vector<1xf32> to vector<1x1x1xf32>
      %68 = vector.extract %67[0, 0, 0] : f32 from vector<1x1x1xf32>
      %69 = vector.broadcast %68 : f32 to vector<1x8x128xf32>
      %c0_31 = arith.constant 0 : index
      %c0_32 = arith.constant 0 : index
      %c0_33 = arith.constant 0 : index
      %70 = vector.load %arg5[%c0_31, %c0_32, %c0_33] : memref<1x8x128xf32, #tpu.memory_space<vmem>>, vector<1x8x128xf32>
      tpu.vector_store %arg5[%c0_31, %c0_32, %c0_33], %69 {strides = array<i32>} : memref<1x8x128xf32, #tpu.memory_space<vmem>>, vector<1x8x128xf32>,
    } else {
    }
    return
  }
  func.func @transform_0(%arg0: i32, %arg1: i32) -> (i32, i32) {
    %c1_i32 = arith.constant 1 : i32
    %0 = arith.muli %arg0, %c1_i32 : i32
    %1 = arith.addi %0, %arg1 : i32
    %c0_i32 = arith.constant 0 : i32
    %2 = arith.minsi %1, %c0_i32 : i32
    %c0_i32_0 = arith.constant 0 : i32
    %c0_i32_1 = arith.constant 0 : i32
    return %2, %c0_i32_0 : i32, i32
  }
  func.func @transform_1(%arg0: i32, %arg1: i32) -> (i32, i32) {
    %c1_i32 = arith.constant 1 : i32
    %0 = arith.muli %arg0, %c1_i32 : i32
    %1 = arith.addi %0, %arg1 : i32
    %c0_i32 = arith.constant 0 : i32
    %2 = arith.minsi %1, %c0_i32 : i32
    %c0_i32_0 = arith.constant 0 : i32
    %c0_i32_1 = arith.constant 0 : i32
    return %2, %c0_i32_0 : i32, i32
  }
  func.func @transform_2(%arg0: i32, %arg1: i32) -> (i32, i32, i32) {
    %c0_i32 = arith.constant 0 : i32
    %c0_i32_0 = arith.constant 0 : i32
    %c0_i32_1 = arith.constant 0 : i32
    return %arg0, %c0_i32, %c0_i32_0 : i32, i32, i32
  }
  func.func @transform_3(%arg0: i32, %arg1: i32) -> (i32, i32, i32) {
    %c0_i32 = arith.constant 0 : i32
    %c0_i32_0 = arith.constant 0 : i32
    %c0_i32_1 = arith.constant 0 : i32
    return %arg0, %c0_i32, %c0_i32_0 : i32, i32, i32
  }
}

</mosaic_0001>

<llo_original>
// kernel: _lambda_.1
$region0: #{_lambda_.1}
  #allocation0 [shape = 'u32[]', space=smem, size = 0x4, offset = 0x4, fixed_abs, tag = 'smem constant byte address 0x4 - core index']
  #allocation1 [shape = 'u32[144,128]{1,0:T(1,128)}', space=vmem, size = 0x12000, scoped, tag = 'internal scratch']
  #allocation2 [shape = 'f32[16,1]{1,0:T(8,128)}', space=vmem, size = 0x2000, scoped, tag = 'scratch operand']
  #allocation3 [shape = 'f32[16,1]{1,0:T(8,128)}', space=vmem, size = 0x2000, scoped, tag = 'scratch operand']
  %s0 = inlined_call_operand.vmem [shape: f32[16,32], index: 0, kind: input, shape index: {}]
  %s1 = inlined_call_operand.vmem [shape: s32[16,1], index: 1, kind: input, shape index: {}]
  %s2 = inlined_call_operand.vmem [shape: f32[1,8,128], index: 2, kind: output, shape index: {0}]
  %s3 = inlined_call_operand.vmem [shape: f32[1,8,128], index: 3, kind: output, shape index: {1}]
  %4 = xla_tuple %s2, %s3
  %s5 = sld [smem:[#allocation0]]
  $region34: #{_lambda_.1} parent=0
    _
  %s7 = ssub.s32 1, %s5
  %s8 = scalar_select 0, %s7, %s5
  // Predicated region
  $region2: #{_lambda_.1} parent=0 // pred_check
    _
  $region3: #{_lambda_.1} parent=0 // pred_check_branch
    %10 = sbr.rel (0) target = $region5
  $region4: #{_lambda_.1} parent=0 // pred_region
    %s11 = sadd.s32 0, 0
    %p12 = scmp.lt.s32.totalorder %s11, 0
    %s13 = scalar_select %p12, %s11, 0
    %s14 = smul.u32 2, %s13
    %p15 = scmp.lt.s32.totalorder %s14, 1
    %s16 = scalar_select %p15, %s14, 1
    %s17 = smul.addr %s16, 8
    %s18 = scalar_lea.vmem %s0, %s17
    %s19 = sadd.s32 0, 0
    %p20 = scmp.lt.s32.totalorder %s19, 0
    %s21 = scalar_select %p20, %s19, 0
    %s22 = smul.u32 2, %s21
  $region5: #{_lambda_.1} parent=0 // pred_fallthru
    _
  // Predicated region
  $region6: #{_lambda_.1} parent=0 // pred_check
    _
  $region7: #{_lambda_.1} parent=0 // pred_check_branch
    %24 = sbr.rel (0) target = $region9
  $region8: #{_lambda_.1} parent=0 // pred_region
    %s25 = sadd.s32 0, 0
    %p26 = scmp.lt.s32.totalorder %s25, 0
    %s27 = scalar_select %p26, %s25, 0
    %s28 = smul.u32 2, %s27
    %p29 = scmp.lt.s32.totalorder %s28, 1
    %s30 = scalar_select %p29, %s28, 1
    %s31 = smul.addr %s30, 8
    %s32 = scalar_lea.vmem %s1, %s31
    %s33 = sadd.s32 0, 0
    %p34 = scmp.lt.s32.totalorder %s33, 0
    %s35 = scalar_select %p34, %s33, 0
    %s36 = smul.u32 2, %s35
  $region9: #{_lambda_.1} parent=0 // pred_fallthru
    _
  %s37 = sadd.s32 0, 0
  %p38 = scmp.lt.s32.totalorder %s37, 0
  %s39 = scalar_select %p38, %s37, 0
  %s40 = smul.u32 2, %s39
  %p41 = scmp.lt.s32.totalorder %s40, 1
  %s42 = scalar_select %p41, %s40, 1
  %s43 = smul.addr %s42, 8
  %s44 = scalar_lea.vmem %s0, %s43
  %s45 = sadd.s32 0, 0
  %p46 = scmp.lt.s32.totalorder %s45, 0
  %s47 = scalar_select %p46, %s45, 0
  %s48 = smul.u32 2, %s47
  %p49 = scmp.lt.s32.totalorder %s48, 1
  %s50 = scalar_select %p49, %s48, 1
  %s51 = smul.addr %s50, 8
  %s52 = scalar_lea.vmem %s1, %s51
  %s53 = sadd.s32 0, 0
  %p54 = scmp.lt.s32.totalorder %s53, 0
  %s55 = scalar_select %p54, %s53, 0
  %s56 = smul.u32 2, %s55
  %p57 = scmp.lt.s32.totalorder %s56, 1
  %s58 = scalar_select %p57, %s56, 1
  %s59 = smul.addr %s58, 8
  %s60 = scalar_lea.vmem %s0, %s59
  %s61 = sadd.s32 0, 0
  %p62 = scmp.lt.s32.totalorder %s61, 0
  %s63 = scalar_select %p62, %s61, 0
  %s64 = smul.u32 2, %s63
  %s65 = sadd.s32 0, 0
  %p66 = scmp.lt.s32.totalorder %s65, 0
  %s67 = scalar_select %p66, %s65, 0
  %s68 = smul.u32 2, %s67
  %p69 = scmp.lt.s32.totalorder %s68, 1
  %s70 = scalar_select %p69, %s68, 1
  %s71 = smul.addr %s70, 8
  %s72 = scalar_lea.vmem %s1, %s71
  %s73 = sadd.s32 0, 0
  %p74 = scmp.lt.s32.totalorder %s73, 0
  %s75 = scalar_select %p74, %s73, 0
  %s76 = smul.u32 2, %s75
  %p77 = scmp.eq.s32.totalorder 0, 0
  // Predicated region
  $region10: #{_lambda_.1} parent=0 // pred_check
    %p78 = pneg %p77
  $region11: #{_lambda_.1} parent=0 // pred_check_branch
    %80 = sbr.rel (%p78) target = $region13
  $region12: #{_lambda_.1} parent=0 // pred_region
    %vm81 = vcmask 7168
    %82 = vst.msk [vmem:[#allocation2] sm:$0xff] %vm81, 0.0
    %83 = vst.msk [vmem:[#allocation2 + $0x8] sm:$0xff] %vm81, 0.0
    %84 = vst.msk [vmem:[#allocation3] sm:$0xff] %vm81, 0.0
    %85 = vst.msk [vmem:[#allocation3 + $0x8] sm:$0xff] %vm81, 0.0
  $region13: #{_lambda_.1} parent=0 // pred_fallthru
    _
  %s86 = sadd.s32 0, 0
  %s87 = smul.u32 %s86, 16
  %v88 = vlaneseq
  %v89 = vshrl.u32 %v88, 7
  %v90 = vadd.s32 %v89, 8
  %v91 = vstv %s87
  %v92 = vadd.s32 %v91, %v89
  %v93 = vadd.s32 %v91, %v90
  %vm94 = vcmp.lt.s32.totalorder %v92, 16
  %vm95 = vcmp.lt.s32.totalorder %v93, 16
  %v96 = vld [vmem:[%s60] sm:$0xff]
  %v97 = vld [vmem:[%s60 + $0x8] sm:$0xff]
  %v98 = vsel %vm94, 1, 0
  %v99 = vsel %vm95, 1, 0
  %vm100 = vcmp.eq.s32.totalorder %v98, 1
  %vm101 = vcmp.eq.s32.totalorder %v99, 1
  %v102 = vsel %vm100, %v96, 0.0
  %v103 = vsel %vm101, %v97, 0.0
  %v104 = vld [vmem:[%s72] sm:$0xff]
  %v105 = vld [vmem:[%s72 + $0x8] sm:$0xff]
  %vm106 = vcmask 261120
  %v107 = vsel %vm106, %v102, -inf
  %108 = vmax.xlane.f32.xlu0 %v107
  %v109 = vpop.xlane.xlu0 %108
  %v110 = vsel %vm106, %v103, -inf
  %111 = vmax.xlane.f32.xlu0 %v110
  %v112 = vpop.xlane.xlu0 %111
  %v113 = vsub.f32 %v102, %v109
  %v114 = vsub.f32 %v103, %v112
  %v115 = vmul.f32 %v113, 1.442695
  %v116 = vpow.pop %v115
  %v117 = vmul.f32 %v114, 1.442695
  %v118 = vpow.pop %v117
  %v119 = vsel %vm106, %v116, 0.0
  %120 = vadd.xlane.f32.xlu0 %v119
  %v121 = vpop.xlane.xlu0 %120
  %v122 = vsel %vm106, %v118, 0.0
  %123 = vadd.xlane.f32.xlu0 %v122
  %v124 = vpop.xlane.xlu0 %123
  %v125 = vlog2.pop %v121
  %v126 = vmul.f32 %v125, 0.6931472
  %v127 = vlog2.pop %v124
  %v128 = vmul.f32 %v127, 0.6931472
  %v129 = vadd.f32 %v109, %v126
  %v130 = vadd.f32 %v112, %v128
  %v131 = vlaneseq
  %v132 = vand.u32 %v131, 127
  %133 = vset.pattern.permute.xlu0 0
  %134 = vperm.xlu0 %133, %v104
  %v135 = vpop.permute.xlu0 %134
  %136 = vset.pattern.permute.xlu0 0
  %137 = vperm.xlu0 %136, %v105
  %v138 = vpop.permute.xlu0 %137
  %vm139 = vcmp.eq.s32.totalorder %v132, %v135
  %vm140 = vcmp.eq.s32.totalorder %v132, %v138
  %v141 = vsel %vm139, %v102, 0.0
  %v142 = vsel %vm140, %v103, 0.0
  %v143 = vsel %vm106, %v141, 0.0
  %144 = vadd.xlane.f32.xlu0 %v143
  %v145 = vpop.xlane.xlu0 %144
  %v146 = vsel %vm106, %v142, 0.0
  %147 = vadd.xlane.f32.xlu0 %v146
  %v148 = vpop.xlane.xlu0 %147
  %vm149 = vcmp.ne.s32.totalorder %v104, 4294967196
  %vm150 = vcmp.ne.s32.totalorder %v105, 4294967196
  %vm151 = vmand %vm94, %vm149
  %vm152 = vmand %vm95, %vm150
  %v153 = vsub.f32 %v145, %v129
  %v154 = vsub.f32 %v148, %v130
  %v155 = vmin.f32 %v153, 0.0
  %v156 = vmin.f32 %v154, 0.0
  %v157 = vmul.f32 %v155, 1.442695
  %v158 = vpow.pop %v157
  %v159 = vmul.f32 %v156, 1.442695
  %v160 = vpow.pop %v159
  %v161 = vsub.f32 1.0, %v158
  %v162 = vsub.f32 1.0, %v160
  %v163 = vmul.f32 %v161, %v161
  %v164 = vmul.f32 %v162, %v162
  %v165 = vmul.f32 %v163, %v155
  %v166 = vmul.f32 %v164, %v156
  %v167 = vld [vmem:[#allocation2] sm:$0xff]
  %v168 = vld [vmem:[#allocation2 + $0x8] sm:$0xff]
  %v169 = vsel %vm151, %v165, 0.0
  %v170 = vsel %vm152, %v166, 0.0
  %v171 = vadd.f32 %v167, %v169
  %v172 = vadd.f32 %v168, %v170
  %vm173 = vcmask 7168
  %174 = vst.msk [vmem:[#allocation2] sm:$0xff] %vm173, %v171
  %175 = vst.msk [vmem:[#allocation2 + $0x8] sm:$0xff] %vm173, %v172
  %v176 = vld [vmem:[#allocation3] sm:$0xff]
  %v177 = vld [vmem:[#allocation3 + $0x8] sm:$0xff]
  %v178 = vsel %vm151, 1, 0
  %v179 = vsel %vm152, 1, 0
  %v180 = vcvt.s32.f32 %v178
  %v181 = vcvt.s32.f32 %v179
  %v182 = vadd.f32 %v176, %v180
  %v183 = vadd.f32 %v177, %v181
  %184 = vst.msk [vmem:[#allocation3] sm:$0xff] %vm173, %v182
  %185 = vst.msk [vmem:[#allocation3 + $0x8] sm:$0xff] %vm173, %v183
  // Predicated region
  $region14: #{_lambda_.1} parent=0 // pred_check
    %p186 = pneg %p77
  $region15: #{_lambda_.1} parent=0 // pred_check_branch
    %188 = sbr.rel (%p186) target = $region17
  $region16: #{_lambda_.1} parent=0 // pred_region
    %v189 = vld [vmem:[#allocation2] sm:$0xff]
    %v190 = vld [vmem:[#allocation2 + $0x8] sm:$0xff]
    %v191 = vsel %vm173, %v189, 0.0
    %v192 = vsel %vm173, %v190, 0.0
    %v193 = vadd.f32 %v191, %v192
    %194 = vadd.xlane.f32.xlu0 %v193
    %v195 = vpop.xlane.xlu0 %194
    %v196 = vrot.slane %v195, 4
    %v197 = vadd.f32 %v195, %v196
    %v198 = vrot.slane %v197, 2
    %v199 = vadd.f32 %v197, %v198
    %v200 = vrot.slane %v199, 1
    %v201 = vadd.f32 %v199, %v200
    %s202 = vtos %v201
    %v203 = vstv %s202
    %204 = vst [vmem:[%s2] sm:$0xff] %v203
    %v205 = vld [vmem:[#allocation3] sm:$0xff]
    %v206 = vld [vmem:[#allocation3 + $0x8] sm:$0xff]
    %v207 = vsel %vm173, %v205, 0.0
    %v208 = vsel %vm173, %v206, 0.0
    %v209 = vadd.f32 %v207, %v208
    %210 = vadd.xlane.f32.xlu0 %v209
    %v211 = vpop.xlane.xlu0 %210
    %v212 = vrot.slane %v211, 4
    %v213 = vadd.f32 %v211, %v212
    %v214 = vrot.slane %v213, 2
    %v215 = vadd.f32 %v213, %v214
    %v216 = vrot.slane %v215, 1
    %v217 = vadd.f32 %v215, %v216
    %s218 = vtos %v217
    %v219 = vstv %s218
    %220 = vst [vmem:[%s3] sm:$0xff] %v219
  $region17: #{_lambda_.1} parent=0 // pred_fallthru
    _
  // Predicated region
  $region18: #{_lambda_.1} parent=0 // pred_check
    _
  $region19: #{_lambda_.1} parent=0 // pred_check_branch
    %222 = sbr.rel (0) target = $region21
  $region20: #{_lambda_.1} parent=0 // pred_region
    _
  $region21: #{_lambda_.1} parent=0 // pred_fallthru
    _
  // Predicated region
  $region22: #{_lambda_.1} parent=0 // pred_check
    _
  $region23: #{_lambda_.1} parent=0 // pred_check_branch
    %224 = sbr.rel (0) target = $region25
  $region24: #{_lambda_.1} parent=0 // pred_region
    _
  $region25: #{_lambda_.1} parent=0 // pred_fallthru
    _
  // Predicated region
  $region26: #{_lambda_.1} parent=0 // pred_check
    _
  $region27: #{_lambda_.1} parent=0 // pred_check_branch
    %226 = sbr.rel (0) target = $region29
  $region28: #{_lambda_.1} parent=0 // pred_region
    _
  $region29: #{_lambda_.1} parent=0 // pred_fallthru
    _
  // Predicated region
  $region30: #{_lambda_.1} parent=0 // pred_check
    _
  $region31: #{_lambda_.1} parent=0 // pred_check_branch
    %228 = sbr.rel (0) target = $region33
  $region32: #{_lambda_.1} parent=0 // pred_region
    _
  $region33: #{_lambda_.1} parent=0 // pred_fallthru
    _

</llo_original>
